<compile_context>
chip_gen: v7x
topology: tpu7x:2x2x1
jax: 0.10.0
libtpu: 0.0.40
codegen_flags: <defaults>
</compile_context>

<pallas_src>
import math
import functools

import jax
import jax.numpy as jnp
from jax.experimental import pallas as pl
from jax.experimental.pallas import tpu as pltpu


# ----------------------------- hardware / tiling helpers ---------------------

@functools.lru_cache(maxsize=None)
def _vmem_limit_bytes():
    """Scoped VMEM limit with headroom: ~96 MiB on v5e/v6e (128 MiB), ~48 MiB on v7x."""
    cap = 128 * 1024 * 1024
    try:
        cap = int(getattr(pltpu.get_tpu_info(), "vmem_capacity_bytes", cap))
    except Exception:
        pass
    return max(32 * 1024 * 1024, min(96 * 1024 * 1024, (3 * cap) // 4))


def _sublane_align(dtype):
    return {4: 8, 2: 16, 1: 32}.get(jnp.dtype(dtype).itemsize, 8)


def _pick_tile(dim, target, align, min_align=None):
    """Largest divisor of `dim` <= target aligned to `align` (retry at min_align);
    the full dim if none exists (full-extent blocks are always legal)."""
    if dim <= target:
        return dim
    if min_align is None:
        min_align = align
    for a in dict.fromkeys((align, min_align)):
        t = (target // a) * a
        while t >= a:
            if dim % t == 0:
                return t
            t -= a
    return dim


def _pick_group(num_heads, head_dim):
    """Heads packed per attention grid step.

    G must divide num_heads and the output block's last dim (G*head_dim) must be
    a multiple of 128 lanes or equal the full hidden size (lane-dense stores)."""
    want = max(1, min(num_heads, 128 // max(head_dim, 1)))
    divisors = [g for g in range(1, num_heads + 1) if num_heads % g == 0]
    ok = [g for g in divisors
          if (g * head_dim) % 128 == 0 or g * head_dim == num_heads * head_dim]
    if not ok:
        return num_heads
    ge = [g for g in ok if g >= want]
    return min(ge) if ge else max(ok)


# ----------------------------- Pallas kernels --------------------------------

def _linear_kernel(x_ref, w_ref, b_ref, o_ref, acc_ref):
    # o = x @ w + b   (K-tiled reduction on the innermost grid axis)
    @pl.when(pl.program_id(2) == 0)
    def _():
        acc_ref[...] = jnp.zeros(acc_ref.shape, jnp.float32)

    acc_ref[...] += jnp.dot(x_ref[...], w_ref[...],
                            preferred_element_type=jnp.float32)

    @pl.when(pl.program_id(2) == pl.num_programs(2) - 1)
    def _():
        o_ref[...] = (acc_ref[...] + b_ref[...].astype(jnp.float32)
                      ).astype(o_ref.dtype)


def _linear_residual_kernel(x_ref, w_ref, b_ref, r_ref, o_ref, acc_ref):
    # o = x @ w + b + residual
    @pl.when(pl.program_id(2) == 0)
    def _():
        acc_ref[...] = jnp.zeros(acc_ref.shape, jnp.float32)

    acc_ref[...] += jnp.dot(x_ref[...], w_ref[...],
                            preferred_element_type=jnp.float32)

    @pl.when(pl.program_id(2) == pl.num_programs(2) - 1)
    def _():
        o_ref[...] = (acc_ref[...]
                      + b_ref[...].astype(jnp.float32)
                      + r_ref[...].astype(jnp.float32)).astype(o_ref.dtype)


def _attention_kernel(q_ref, k_ref, v_ref, bias_ref, o_ref,
                      m_ref, l_ref, acc_ref, *, inv_norm, exp_dtype, approx_recip):
    # Flash-style online softmax; grid = (head_groups, q_tiles, kv_tiles).
    # bias_ref already contains alibi with the masked_fill folded in.
    kv = pl.program_id(2)

    @pl.when(kv == 0)
    def _():
        m_ref[...] = jnp.full(m_ref.shape, -jnp.inf, jnp.float32)
        l_ref[...] = jnp.zeros(l_ref.shape, jnp.float32)
        acc_ref[...] = jnp.zeros(acc_ref.shape, jnp.float32)

    q = q_ref[...]                                # (G, tq, hd)
    k = k_ref[...]                                # (G, tkv, hd)
    v = v_ref[...]                                # (G, tkv, hd)
    bias = bias_ref[...].astype(jnp.float32)      # (G, tq, tkv)

    # baddbmm: bias + inv_norm * (Q @ K^T); softmax statistics stay f32.
    s = bias + inv_norm * jnp.einsum('gqd,gkd->gqk', q, k,
                                     preferred_element_type=jnp.float32)

    m_prev = m_ref[...]
    m_new = jnp.maximum(m_prev, s.max(axis=-1, keepdims=True))
    # exp in exp_dtype (bf16 on the bf16 path => ~2x EUP throughput on v6e/v7x).
    alpha = jnp.exp((m_prev - m_new).astype(exp_dtype)).astype(jnp.float32)
    p = jnp.exp((s - m_new).astype(exp_dtype))
    l_ref[...] = alpha * l_ref[...] + p.sum(axis=-1, keepdims=True, dtype=jnp.float32)
    acc_ref[...] = alpha * acc_ref[...] + jnp.einsum(
        'gqk,gkd->gqd', p.astype(v.dtype), v, preferred_element_type=jnp.float32)
    m_ref[...] = m_new

    @pl.when(kv == pl.num_programs(2) - 1)
    def _():
        G, tq, hd = acc_ref.shape
        if approx_recip:
            norm = pl.reciprocal(l_ref[...], approx=True)   # (G, tq, 1)
        else:
            norm = 1.0 / l_ref[...]                         # exact path (f32)
        # merge_heads fused here: heads land lane-contiguous in the (1, tq, G*hd)
        # output block, which maps straight into the [B, S, H] output array.
        for g in range(G):
            o_ref[0, :, g * hd:(g + 1) * hd] = (acc_ref[g] * norm[g]).astype(o_ref.dtype)


# ----------------------------- wrappers ---------------------------------------

def pallas_linear(x, w_t, b, residual=None, out_dtype=None):
    """x: [M, K]; w_t: [K, N] (pre-transposed weight); b: [N]; residual: [M, N]."""
    M, K = x.shape
    N = w_t.shape[1]
    if out_dtype is None:
        out_dtype = x.dtype
    b2 = b.reshape(1, N)

    tm = _pick_tile(M, 512, _sublane_align(x.dtype), 8)
    tn = _pick_tile(N, 512, 128)
    tk = _pick_tile(K, 1024, 256, 128)    # multiple of 256 keeps v6e/v7x MXU full depth
    grid = (M // tm, N // tn, K // tk)

    in_specs = [
        pl.BlockSpec((tm, tk), lambda i, j, kk: (i, kk)),
        pl.BlockSpec((tk, tn), lambda i, j, kk: (kk, j)),
        pl.BlockSpec((1, tn), lambda i, j, kk: (0, j)),
    ]
    bytes_accessed = (x.size * x.dtype.itemsize + w_t.size * w_t.dtype.itemsize
                      + M * N * jnp.dtype(out_dtype).itemsize)
    if residual is None:
        kernel, args = _linear_kernel, (x, w_t, b2)
    else:
        kernel, args = _linear_residual_kernel, (x, w_t, b2, residual)
        in_specs = in_specs + [pl.BlockSpec((tm, tn), lambda i, j, kk: (i, j))]
        bytes_accessed += residual.size * residual.dtype.itemsize

    return pl.pallas_call(
        kernel,
        out_shape=jax.ShapeDtypeStruct((M, N), out_dtype),
        grid=grid,
        in_specs=in_specs,
        out_specs=pl.BlockSpec((tm, tn), lambda i, j, kk: (i, j)),
        scratch_shapes=[pltpu.VMEM((tm, tn), jnp.float32)],
        compiler_params=pltpu.CompilerParams(
            dimension_semantics=("parallel", "parallel", "arbitrary"),
            vmem_limit_bytes=_vmem_limit_bytes()),
        cost_estimate=pl.CostEstimate(flops=int(2 * M * N * K), transcendentals=0,
                                      bytes_accessed=int(bytes_accessed)),
    )(*args)


def pallas_attention(q, k, v, bias, inv_norm, num_heads, head_dim,
                     out_dtype=None, exp_dtype=jnp.float32, approx_recip=True):
    """q, k, v: [B*nh, S, hd]; bias: [B*nh, S, S] (alibi with masked_fill folded in).

    Returns the *merged* context directly as [B, S, nh*hd] (merge_heads fused into
    out_specs), lane-dense when G*hd is a multiple of 128.
    """
    BH, S, hd = q.shape
    B = BH // num_heads
    if out_dtype is None:
        out_dtype = q.dtype

    G = _pick_group(num_heads, hd)        # heads per grid step (lane density / overhead)
    gpb = num_heads // G                  # head-groups per batch
    tq = _pick_tile(S, 256, _sublane_align(q.dtype), 8)
    tkv = _pick_tile(S, 512, 256, 128)    # 512 => full-depth MXU P·V on v6e/v7x
    grid = (B * gpb, S // tq, S // tkv)

    kernel = functools.partial(_attention_kernel, inv_norm=inv_norm,
                               exp_dtype=exp_dtype, approx_recip=approx_recip)
    flops = 4 * BH * S * S * hd           # QK^T + P·V
    bytes_accessed = ((q.size + k.size + v.size) * q.dtype.itemsize
                      + bias.size * bias.dtype.itemsize
                      + B * S * num_heads * hd * jnp.dtype(out_dtype).itemsize)

    return pl.pallas_call(
        kernel,
        out_shape=jax.ShapeDtypeStruct((B, S, num_heads * hd), out_dtype),
        grid=grid,
        in_specs=[
            pl.BlockSpec((G, tq, hd), lambda g, qi, ki: (g, qi, 0)),
            pl.BlockSpec((G, tkv, hd), lambda g, qi, ki: (g, ki, 0)),
            pl.BlockSpec((G, tkv, hd), lambda g, qi, ki: (g, ki, 0)),
            pl.BlockSpec((G, tq, tkv), lambda g, qi, ki: (g, qi, ki)),
        ],
        out_specs=pl.BlockSpec((1, tq, G * hd),
                               lambda g, qi, ki: (g // gpb, qi, g % gpb)),
        scratch_shapes=[
            pltpu.VMEM((G, tq, 1), jnp.float32),    # running max
            pltpu.VMEM((G, tq, 1), jnp.float32),    # running denom
            pltpu.VMEM((G, tq, hd), jnp.float32),   # output accumulator
        ],
        compiler_params=pltpu.CompilerParams(
            dimension_semantics=("parallel", "parallel", "arbitrary"),
            vmem_limit_bytes=_vmem_limit_bytes()),
        cost_estimate=pl.CostEstimate(flops=int(flops),
                                      transcendentals=int(BH * S * S),
                                      bytes_accessed=int(bytes_accessed)),
    )(q, k, v, bias)


def prepare_bloom_attention_params(weight_q, bias_q, weight_d, bias_d,
                                   compute_dtype=None):
    """One-time (parameter-load time) weight transpose + cast.

    weight_q: [3H, H] -> wq_t [H, 3H];  weight_d: [H, H] -> wd_t [H, H].
    Doing this once avoids a weight-sized HBM transpose+cast pass per forward.
    """
    dt = weight_q.dtype if compute_dtype is None else compute_dtype
    return {
        "wq_t": jnp.asarray(weight_q.T, dtype=dt),
        "bq": jnp.asarray(bias_q),
        "wd_t": jnp.asarray(weight_d.T, dtype=dt),
        "bd": jnp.asarray(bias_d),
    }


def bloom_attention_forward(hidden_states, residual, alibi, attention_mask, params,
                            num_heads, head_dim, use_cache=False, compute_dtype=None):
    """Mirrors TtBloomAttention.forward.

    hidden_states, residual: [B, S, H]
    alibi:                   [B*num_heads, S, S] (or broadcastable), beta = 1.0
    attention_mask:          [B*num_heads, S, S] bool/int, nonzero = masked
    params:                  from prepare_bloom_attention_params (pre-transposed weights)
    compute_dtype:           dtype fed to the MXU (bf16 on v6e/v7x); softmax stats,
                             accumulation and the residual add stay float32.
    Returns (output [B, S, H] in hidden_states.dtype, present)
    """
    B, S, H = hidden_states.shape
    out_dtype = hidden_states.dtype
    cdt = out_dtype if compute_dtype is None else compute_dtype
    is_bf16 = jnp.dtype(cdt) == jnp.dtype(jnp.bfloat16)

    # fused_qkv = query_key_value(hidden_states)
    x2d = hidden_states.reshape(B * S, H).astype(cdt)
    fused = pallas_linear(x2d, params["wq_t"], params["bq"], out_dtype=cdt)  # [B*S, 3H]

    # split_heads: [B, S, nh, 3, hd] -> q, k, v
    fused = fused.reshape(B, S, num_heads, 3, head_dim)
    q = fused[..., 0, :]
    k = fused[..., 1, :]
    v = fused[..., 2, :]
    # torch module sets present BEFORE the head transpose: layout [B, S, nh, hd]
    present = (k, v) if use_cache else None

    # reshape to [B*nh, S, hd]
    # TODO(synk): express these gathers via BlockSpec index_maps for head_dim>=128.
    q = q.transpose(0, 2, 1, 3).reshape(B * num_heads, S, head_dim)
    k = k.transpose(0, 2, 1, 3).reshape(B * num_heads, S, head_dim)
    v = v.transpose(0, 2, 1, 3).reshape(B * num_heads, S, head_dim)

    # Fold masked_fill(-100000) into the alibi bias once: a single fused
    # where+cast pass, and the kernel streams one compute-dtype tile per kv step
    # instead of alibi + an int8 mask (removes 1/3 of the score-stream DMA and the
    # per-tile compare/select).
    bias = jnp.where(attention_mask != 0, jnp.float32(-100000.0),
                     alibi.astype(jnp.float32)).astype(cdt)
    bias = jnp.broadcast_to(bias, (B * num_heads, S, S))

    inv_norm = 1.0 / math.sqrt(head_dim)
    ctx = pallas_attention(
        q, k, v, bias, inv_norm, num_heads, head_dim,
        out_dtype=cdt,
        exp_dtype=jnp.bfloat16 if is_bf16 else jnp.float32,
        approx_recip=is_bf16)                       # exact divide on the f32 path
    # merge_heads already fused into out_specs: ctx is [B, S, H]
    ctx2d = ctx.reshape(B * S, H)

    # dense projection + residual add (fused, residual added in f32)
    out = pallas_linear(ctx2d, params["wd_t"], params["bd"],
                        residual=residual.reshape(B * S, H), out_dtype=out_dtype)
    # TODO(synk): head_mask multiply and layer_past concatenation are not implemented
    #             (the reference forward defaults them to None).
    return out.reshape(B, S, H), present


# ----------------------------- reference (pure JAX) ---------------------------

def _reference(hidden, residual, alibi, mask, wq, bq, wd, bd, nh, hd):
    B, S, H = hidden.shape
    fused = hidden @ wq.T + bq
    fused = fused.reshape(B, S, nh, 3, hd)
    q = fused[..., 0, :].transpose(0, 2, 1, 3).reshape(B * nh, S, hd)
    k = fused[..., 1, :].transpose(0, 2, 1, 3).reshape(B * nh, S, hd)
    v = fused[..., 2, :].transpose(0, 2, 1, 3).reshape(B * nh, S, hd)
    scores = alibi + (1.0 / math.sqrt(hd)) * jnp.einsum('bqd,bkd->bqk', q, k)
    scores = jnp.where(mask != 0, -100000.0, scores)
    p = jax.nn.softmax(scores.astype(jnp.float32), axis=-1)
    ctx = jnp.einsum('bqk,bkd->bqd', p, v)
    ctx = ctx.reshape(B, nh, S, hd).transpose(0, 2, 1, 3).reshape(B, S, H)
    return ctx @ wd.T + bd + residual


# ----------------------------- main -------------------------------------------

if __name__ == "__main__":
    B, S, nh, hd = 2, 8, 4, 8
    H = nh * hd  # hidden_size = 32

    key = jax.random.PRNGKey(0)
    ks = jax.random.split(key, 6)
    hidden = jax.random.normal(ks[0], (B, S, H), jnp.float32)
    residual = jax.random.normal(ks[1], (B, S, H), jnp.float32)
    weight_q = jax.random.normal(ks[2], (3 * H, H), jnp.float32) * 0.05
    bias_q = jax.random.normal(ks[3], (3 * H,), jnp.float32) * 0.05
    weight_d = jax.random.normal(ks[4], (H, H), jnp.float32) * 0.05
    bias_d = jax.random.normal(ks[5], (H,), jnp.float32) * 0.05

    # Bloom-style alibi bias per head (broadcast over query positions).
    slopes = 2.0 ** (-8.0 * (jnp.arange(1, nh + 1, dtype=jnp.float32) / nh))
    alibi = slopes[:, None, None] * jnp.arange(S, dtype=jnp.float32)[None, None, :]
    alibi = jnp.broadcast_to(alibi[None], (B, nh, S, S)).reshape(B * nh, S, S)

    # Causal attention mask: True = masked (future positions).
    causal = jnp.triu(jnp.ones((S, S), jnp.int32), k=1)
    attn_mask = jnp.broadcast_to(causal[None], (B * nh, S, S)).astype(jnp.bool_)

    ref = _reference(hidden, residual, alibi, attn_mask,
                     weight_q, bias_q, weight_d, bias_d, nh, hd)

    # f32 compute path (exact-ish vs reference: f32 matmuls, f32 exp, exact divide)
    params_f32 = prepare_bloom_attention_params(weight_q, bias_q, weight_d, bias_d)
    out, present = bloom_attention_forward(
        hidden, residual, alibi, attn_mask, params_f32, nh, hd, use_cache=False)
    out = jax.block_until_ready(out)
    assert out.shape == (B, S, H)
    assert out.dtype == hidden.dtype
    assert jnp.allclose(out, ref, atol=2e-3, rtol=2e-3), "f32 path mismatch vs reference"

    # bf16 MXU path (production v6e/v7x): bf16 matmuls + bf16 exp, f32 softmax stats.
    params_bf16 = prepare_bloom_attention_params(weight_q, bias_q, weight_d, bias_d,
                                                 compute_dtype=jnp.bfloat16)
    out_bf16, _ = bloom_attention_forward(
        hidden, residual, alibi, attn_mask, params_bf16, nh, hd,
        use_cache=False, compute_dtype=jnp.bfloat16)
    out_bf16 = jax.block_until_ready(out_bf16)
    assert out_bf16.shape == (B, S, H)
    assert jnp.allclose(out_bf16, ref, atol=5e-2, rtol=5e-2), "bf16 path mismatch vs reference"

    print("KERNEL_OK")
</pallas_src>

<mosaic_0001>
module attributes {stable_mosaic.version = 11 : i64} {
  func.func @_linear_kernel(%arg0: i32, %arg1: i32, %arg2: i32, %arg3: memref<16x32xf32, #tpu.memory_space<vmem>>, %arg4: memref<32x96xf32, #tpu.memory_space<vmem>>, %arg5: memref<1x96xf32, #tpu.memory_space<vmem>>, %arg6: memref<16x96xf32, #tpu.memory_space<vmem>>, %arg7: memref<16x96xf32, #tpu.memory_space<vmem>>) attributes {dimension_semantics = [#tpu.dimension_semantics<parallel>, #tpu.dimension_semantics<parallel>, #tpu.dimension_semantics<arbitrary>], iteration_bounds = array<i64: 1, 1, 1>, scalar_prefetch = 0 : i64, scratch_operands = 1 : i64, tpu.core_type = #tpu.core_type<tc>, window_params = [{transform_indices = @transform_0, window_bounds = array<i64: 16, 32>}, {transform_indices = @transform_1, window_bounds = array<i64: 32, 96>}, {transform_indices = @transform_2, window_bounds = array<i64: 1, 96>}, {transform_indices = @transform_3, window_bounds = array<i64: 16, 96>}]} {
    %c0_i32 = arith.constant 0 : i32
    %0 = arith.cmpi eq, %arg2, %c0_i32 : i32
    %1 = arith.extui %0 : i1 to i32
    %c0_i32_0 = arith.constant 0 : i32
    %2 = arith.cmpi ne, %1, %c0_i32_0 : i32
    scf.if %2 {
      %cst_10 = arith.constant 0.000000e+00 : f32
      %12 = vector.broadcast %cst_10 : f32 to vector<16x96xf32>
      %c0_11 = arith.constant 0 : index
      %c0_12 = arith.constant 0 : index
      %13 = vector.load %arg7[%c0_11, %c0_12] : memref<16x96xf32, #tpu.memory_space<vmem>>, vector<16x96xf32>
      tpu.vector_store %arg7[%c0_11, %c0_12], %12 {strides = array<i32>} : memref<16x96xf32, #tpu.memory_space<vmem>>, vector<16x96xf32>,
    } else {
    }
    %c0 = arith.constant 0 : index
    %c0_1 = arith.constant 0 : index
    %3 = vector.load %arg7[%c0, %c0_1] : memref<16x96xf32, #tpu.memory_space<vmem>>, vector<16x96xf32>
    %c0_2 = arith.constant 0 : index
    %c0_3 = arith.constant 0 : index
    %4 = vector.load %arg3[%c0_2, %c0_3] : memref<16x32xf32, #tpu.memory_space<vmem>>, vector<16x32xf32>
    %c0_4 = arith.constant 0 : index
    %c0_5 = arith.constant 0 : index
    %5 = vector.load %arg4[%c0_4, %c0_5] : memref<32x96xf32, #tpu.memory_space<vmem>>, vector<32x96xf32>
    %cst = arith.constant dense<0.000000e+00> : vector<16x96xf32>
    %6 = tpu.matmul %4, %5, %cst {dimension_numbers = #tpu.dot_dimension_numbers<[1], [0], [0], [1], [0, 0, 1, 1], [], []>} : vector<16x32xf32>, vector<32x96xf32>, vector<16x96xf32> -> vector<16x96xf32>
    %7 = arith.addf %3, %6 : vector<16x96xf32>
    %c0_6 = arith.constant 0 : index
    %c0_7 = arith.constant 0 : index
    %8 = vector.load %arg7[%c0_6, %c0_7] : memref<16x96xf32, #tpu.memory_space<vmem>>, vector<16x96xf32>
    tpu.vector_store %arg7[%c0_6, %c0_7], %7 {strides = array<i32>} : memref<16x96xf32, #tpu.memory_space<vmem>>, vector<16x96xf32>,
    %c0_i32_8 = arith.constant 0 : i32
    %9 = arith.cmpi eq, %arg2, %c0_i32_8 : i32
    %10 = arith.extui %9 : i1 to i32
    %c0_i32_9 = arith.constant 0 : i32
    %11 = arith.cmpi ne, %10, %c0_i32_9 : i32
    scf.if %11 {
      %c0_10 = arith.constant 0 : index
      %c0_11 = arith.constant 0 : index
      %12 = vector.load %arg7[%c0_10, %c0_11] : memref<16x96xf32, #tpu.memory_space<vmem>>, vector<16x96xf32>
      %c0_12 = arith.constant 0 : index
      %c0_13 = arith.constant 0 : index
      %13 = vector.load %arg5[%c0_12, %c0_13] : memref<1x96xf32, #tpu.memory_space<vmem>>, vector<1x96xf32>
      %14 = vector.broadcast %13 : vector<1x96xf32> to vector<16x96xf32>
      %15 = arith.addf %12, %14 : vector<16x96xf32>
      %c0_14 = arith.constant 0 : index
      %c0_15 = arith.constant 0 : index
      %16 = vector.load %arg6[%c0_14, %c0_15] : memref<16x96xf32, #tpu.memory_space<vmem>>, vector<16x96xf32>
      tpu.vector_store %arg6[%c0_14, %c0_15], %15 {strides = array<i32>} : memref<16x96xf32, #tpu.memory_space<vmem>>, vector<16x96xf32>,
    } else {
    }
    return
  }
  func.func @transform_0(%arg0: i32, %arg1: i32, %arg2: i32) -> (i32, i32) {
    %c0_i32 = arith.constant 0 : i32
    return %arg0, %arg2 : i32, i32
  }
  func.func @transform_1(%arg0: i32, %arg1: i32, %arg2: i32) -> (i32, i32) {
    %c0_i32 = arith.constant 0 : i32
    return %arg2, %arg1 : i32, i32
  }
  func.func @transform_2(%arg0: i32, %arg1: i32, %arg2: i32) -> (i32, i32) {
    %c0_i32 = arith.constant 0 : i32
    %c0_i32_0 = arith.constant 0 : i32
    return %c0_i32, %arg1 : i32, i32
  }
  func.func @transform_3(%arg0: i32, %arg1: i32, %arg2: i32) -> (i32, i32) {
    %c0_i32 = arith.constant 0 : i32
    return %arg0, %arg1 : i32, i32
  }
}

</mosaic_0001>

<llo_original>
// kernel: tpu_custom_call.1
$region0: #{tpu_custom_call.1}
  #allocation0 [shape = 'u32[]', space=smem, size = 0x4, offset = 0x4, fixed_abs, tag = 'smem constant byte address 0x4 - core index']
  #allocation1 [shape = 'u32[144,128]{1,0:T(1,128)}', space=vmem, size = 0x12000, scoped, tag = 'internal scratch']
  #allocation2 [shape = 'f32[16,96]{1,0:T(8,128)}', space=vmem, size = 0x2000, scoped, tag = 'scratch operand']
  %s0 = inlined_call_operand.hbm [shape: f32[16,32], index: 0, kind: input, shape index: {}]
  %s1 = inlined_call_operand.hbm [shape: f32[32,96], index: 1, kind: input, shape index: {}]
  %s2 = inlined_call_operand.hbm [shape: f32[1,96], index: 2, kind: input, shape index: {}]
  %s3 = inlined_call_operand.hbm [shape: f32[16,96], index: 3, kind: output, shape index: {}]
  %s4 = sld [smem:[#allocation0]]
  $region42: #{tpu_custom_call.1} parent=0
    _
  %s6 = ssub.s32 1, %s4
  %s7 = scalar_select 0, %s6, %s4
  $region1: #{tpu_custom_call.1} parent=0
    #allocation3 [shape = 'u8[8192]{0}', space=vmem, size = 0x2000, scoped, tag = 'input window, operand 0, single buffered']
    #allocation4 [shape = 's32[1]{0}', space=sflag, size = 0x4, scoped, tag = 'scoped memory for tpu_custom_call.1']
    #allocation5 [shape = 's32[1]{0}', space=sflag, size = 0x4, scoped, tag = 'scoped memory for tpu_custom_call.1']
    #allocation6 [shape = 'u8[16384]{0}', space=vmem, size = 0x4000, scoped, tag = 'input window, operand 1, single buffered']
    #allocation7 [shape = 's32[1]{0}', space=sflag, size = 0x4, scoped, tag = 'scoped memory for tpu_custom_call.1']
    #allocation8 [shape = 'u8[512]{0}', space=vmem, size = 0x400, scoped, tag = 'input window, operand 2, single buffered']
    #allocation9 [shape = 'u8[8192]{0}', space=vmem, size = 0x2000, scoped, tag = 'output window, operand 0, single buffered']
    %8 = vsyncpa [#allocation4], 0
    %9 = vsyncpa [#allocation7], 0
    %10 = vsyncpa [#allocation5], 0
    // Predicated region
    $region2: #{tpu_custom_call.1} parent=1 // pred_check
      _
    $region3: #{tpu_custom_call.1} parent=1 // pred_check_branch
      %12 = sbr.rel (0) target = $region5
    $region4: #{tpu_custom_call.1} parent=1 // pred_region
      %s14 = ssub.s32 256, 256
      %15 = vsyncadd [#allocation4], %s14
      %s16 = sshll.u32 [#allocation3], 4
      %s17 = int_to_ptr.vmem [resolvable:$true] %s16
      %22 = dma.hbm_to_vmem [thread:$0]  %s0, 256, %s17, [#allocation4], 128, 128, 8
    $region5: #{tpu_custom_call.1} parent=1 // pred_fallthru
      _
    // Predicated region
    $region6: #{tpu_custom_call.1} parent=1 // pred_check
      _
    $region7: #{tpu_custom_call.1} parent=1 // pred_check_branch
      %24 = sbr.rel (0) target = $region9
    $region8: #{tpu_custom_call.1} parent=1 // pred_region
      %s26 = ssub.s32 512, 512
      %27 = vsyncadd [#allocation7], %s26
      %s28 = sshll.u32 [#allocation6], 4
      %s29 = int_to_ptr.vmem [resolvable:$true] %s28
      %34 = dma.hbm_to_vmem [thread:$0]  %s1, 512, %s29, [#allocation7], 128, 128, 8
    $region9: #{tpu_custom_call.1} parent=1 // pred_fallthru
      _
    // Predicated region
    $region10: #{tpu_custom_call.1} parent=1 // pred_check
      _
    $region11: #{tpu_custom_call.1} parent=1 // pred_check_branch
      %36 = sbr.rel (0) target = $region13
    $region12: #{tpu_custom_call.1} parent=1 // pred_region
      %s38 = ssub.s32 16, 16
      %39 = vsyncadd [#allocation7], %s38
      %s41 = sshll.u32 [#allocation8], 4
      %s42 = int_to_ptr.vmem [resolvable:$true] %s41
      %44 = dma.hbm_to_vmem [thread:$0]  %s2, 16, %s42, [#allocation7]
    $region13: #{tpu_custom_call.1} parent=1 // pred_fallthru
      _
    // Predicated region
    $region14: #{tpu_custom_call.1} parent=1 // pred_check
      _
    $region15: #{tpu_custom_call.1} parent=1 // pred_check_branch
      %46 = sbr.rel (0) target = $region17
    $region16: #{tpu_custom_call.1} parent=1 // pred_region
      %47 = dma.done [#allocation4], 256
    $region17: #{tpu_custom_call.1} parent=1 // pred_fallthru
      _
    // Predicated region
    $region18: #{tpu_custom_call.1} parent=1 // pred_check
      _
    $region19: #{tpu_custom_call.1} parent=1 // pred_check_branch
      %49 = sbr.rel (0) target = $region21
    $region20: #{tpu_custom_call.1} parent=1 // pred_region
      %50 = dma.done [#allocation7], 512
    $region21: #{tpu_custom_call.1} parent=1 // pred_fallthru
      _
    // Predicated region
    $region22: #{tpu_custom_call.1} parent=1 // pred_check
      _
    $region23: #{tpu_custom_call.1} parent=1 // pred_check_branch
      %52 = sbr.rel (0) target = $region25
    $region24: #{tpu_custom_call.1} parent=1 // pred_region
      %53 = dma.done [#allocation7], 16
    $region25: #{tpu_custom_call.1} parent=1 // pred_fallthru
      _
    %p54 = scmp.eq.s32.totalorder 0, 0
    // Predicated region
    $region26: #{tpu_custom_call.1} parent=1 // pred_check
      %p55 = pneg %p54
    $region27: #{tpu_custom_call.1} parent=1 // pred_check_branch
      %57 = sbr.rel (%p55) target = $region29
    $region28: #{tpu_custom_call.1} parent=1 // pred_region
      %vm58 = vcmask 785408
      %59 = vst.msk [vmem:[#allocation2] sm:$0xff] %vm58, 0.0
      %60 = vst.msk [vmem:[#allocation2 + $0x8] sm:$0xff] %vm58, 0.0
    $region29: #{tpu_custom_call.1} parent=1 // pred_fallthru
      _
    %v61 = vld [vmem:[#allocation2] sm:$0xff]
    %v62 = vld [vmem:[#allocation2 + $0x8] sm:$0xff]
    %v63 = vld [vmem:[#allocation3] sm:$0xff]
    %v64 = vld [vmem:[#allocation3 + $0x8] sm:$0xff]
    %v65 = vld [vmem:[#allocation6] sm:$0xff]
    %v66 = vld [vmem:[#allocation6 + $0x8] sm:$0xff]
    %v67 = vld [vmem:[#allocation6 + $0x10] sm:$0xff]
    %v68 = vld [vmem:[#allocation6 + $0x18] sm:$0xff]
    %vm69 = vcmask 261120
    %v71 = vsel %vm69, %v63, 0
    %v74 = vsel %vm69, %v64, 0
    %76 = vmatprep.subr.mxu0 0.0
    %77 = vmatpush1.msra.mxu0 %v65
    %78 = vmatprep.subr.mxu0 0.0
    %79 = vmatpush1.msra.mxu0 %v66
    %80 = vmatprep.subr.mxu0 0.0
    %81 = vmatpush1.msra.mxu0 %v67
    %82 = vmatprep.subr.mxu0 0.0
    %83 = vmatpush1.msra.mxu0 %v68
    %84 = vmatprep.subr.mxu0 0.0
    %85 = vmatpush1.msra.mxu0 0.0
    %86 = vmatprep.subr.mxu0 0.0
    %87 = vmatpush1.msra.mxu0 0.0
    %88 = vmatprep.subr.mxu0 0.0
    %89 = vmatpush1.msra.mxu0 0.0
    %90 = vmatprep.subr.mxu0 0.0
    %91 = vmatpush1.msra.mxu0 0.0
    %92 = vmatprep.subr.mxu0 0.0
    %93 = vmatpush1.msra.mxu0 0.0
    %94 = vmatprep.subr.mxu0 0.0
    %95 = vmatpush1.msra.mxu0 0.0
    %96 = vmatprep.subr.mxu0 0.0
    %97 = vmatpush1.msra.mxu0 0.0
    %98 = vmatprep.subr.mxu0 0.0
    %99 = vmatpush1.msra.mxu0 0.0
    %100 = vmatprep.subr.mxu0 0.0
    %101 = vmatpush1.msra.mxu0 0.0
    %102 = vmatprep.subr.mxu0 0.0
    %103 = vmatpush1.msra.mxu0 0.0
    %104 = vmatprep.subr.mxu0 0.0
    %105 = vmatpush1.msra.mxu0 0.0
    %106 = vmatprep.subr.mxu0 0.0
    %107 = vmatpush1.msra.mxu0 0.0
    %108 = vmatprep.subr.mxu0 0.0
    %109 = vmatpush1.msra.mxu0 0.0
    %110 = vmatprep.subr.mxu0 0.0
    %111 = vmatpush1.msra.mxu0 0.0
    %112 = vmatprep.subr.mxu0 0.0
    %113 = vmatpush1.msra.mxu0 0.0
    %114 = vmatprep.subr.mxu0 0.0
    %115 = vmatpush1.msra.mxu0 0.0
    %116 = vmatprep.subr.mxu0 0.0
    %117 = vmatpush1.msra.mxu0 0.0
    %118 = vmatprep.subr.mxu0 0.0
    %119 = vmatpush1.msra.mxu0 0.0
    %120 = vmatprep.subr.mxu0 0.0
    %121 = vmatpush1.msra.mxu0 0.0
    %122 = vmatprep.subr.mxu0 0.0
    %123 = vmatpush1.msra.mxu0 0.0
    %124 = vmatprep.subr.mxu0 0.0
    %125 = vmatpush1.msra.mxu0 0.0
    %126 = vmatprep.subr.mxu0 0.0
    %127 = vmatpush1.msra.mxu0 0.0
    %128 = vmatprep.subr.mxu0 0.0
    %129 = vmatpush1.msra.mxu0 0.0
    %130 = vmatprep.subr.mxu0 0.0
    %131 = vmatpush1.msra.mxu0 0.0
    %132 = vmatprep.subr.mxu0 0.0
    %133 = vmatpush1.msra.mxu0 0.0
    %134 = vmatprep.subr.mxu0 0.0
    %135 = vmatpush1.msra.mxu0 0.0
    %136 = vmatprep.subr.mxu0 0.0
    %137 = vmatpush1.msra.mxu0 0.0
    %138 = vmatprep.subr.mxu0 0.0
    %139 = vmatpush1.msra.mxu0 0.0
    %140 = vmatprep.mubr.f32.mxu0 0.0
    %141 = vmatmul.mubr.f32.gmra.mrb[0].mxu0 %v71
    %v142 = vpop.f32.mrb[0].mxu0
    %v143 = vadd.f32 0.0, %v142
    %v144 = vpop.f32.mrb[0].mxu0
    %145 = vmatprep.mubr.f32.mxu0 0.0
    %146 = vmatmul.mubr.f32.gmra.mrb[0].mxu0 %v74
    %v147 = vpop.f32.mrb[0].mxu0
    %v148 = vadd.f32 0.0, %v147
    %v149 = vpop.f32.mrb[0].mxu0
    %150 = vdwg.mxu0
    %v151 = vadd.f32 %v61, %v143
    %v152 = vadd.f32 %v62, %v148
    %vm153 = vcmask 785408
    %154 = vst.msk [vmem:[#allocation2] sm:$0xff] %vm153, %v151
    %155 = vst.msk [vmem:[#allocation2 + $0x8] sm:$0xff] %vm153, %v152
    // Predicated region
    $region30: #{tpu_custom_call.1} parent=1 // pred_check
      %p156 = pneg %p54
    $region31: #{tpu_custom_call.1} parent=1 // pred_check_branch
      %158 = sbr.rel (%p156) target = $region33
    $region32: #{tpu_custom_call.1} parent=1 // pred_region
      %v159 = vld [vmem:[#allocation2] sm:$0xff]
      %v160 = vld [vmem:[#allocation2 + $0x8] sm:$0xff]
      %v161 = vld [vmem:[#allocation8] sm:$0x1]
      %v163 = vlaneseq
      %v164 = vshrl.u32 %v163, 7
      %v165 = vsub.s32 0, %v164
      %v166 = vrot.slane %v161, %v165
      %v168 = vadd.f32 %v159, %v166
      %v169 = vadd.f32 %v160, %v166
      %170 = vst.msk [vmem:[#allocation9] sm:$0xff] %vm153, %v168
      %171 = vst.msk [vmem:[#allocation9 + $0x8] sm:$0xff] %vm153, %v169
    $region33: #{tpu_custom_call.1} parent=1 // pred_fallthru
      _
    // Predicated region
    $region34: #{tpu_custom_call.1} parent=1 // pred_check
      _
    $region35: #{tpu_custom_call.1} parent=1 // pred_check_branch
      %173 = sbr.rel (0) target = $region37
    $region36: #{tpu_custom_call.1} parent=1 // pred_region
      %s175 = ssub.s32 256, 256
      %176 = vsyncadd [#allocation5], %s175
      %s177 = sshll.u32 [#allocation9], 4
      %s178 = int_to_ptr.vmem [resolvable:$true] %s177
      %183 = dma.vmem_to_hbm [thread:$0]  %s178, 256, %s3, [#allocation5], 128, 128, 8
    $region37: #{tpu_custom_call.1} parent=1 // pred_fallthru
      _
    // Predicated region
    $region38: #{tpu_custom_call.1} parent=1 // pred_check
      _
    $region39: #{tpu_custom_call.1} parent=1 // pred_check_branch
      %185 = sbr.rel (0) target = $region41
    $region40: #{tpu_custom_call.1} parent=1 // pred_region
      %186 = dma.done [#allocation5], 256
    $region41: #{tpu_custom_call.1} parent=1 // pred_fallthru
      _
    %187 = vsyncpa [#allocation4], 1
    %188 = vsyncpa [#allocation7], 1
    %189 = vsyncpa [#allocation5], 1

</llo_original>
